<compile_context>
chip_gen: v7x
topology: tpu7x:2x2x1
jax: 0.10.0
libtpu: 0.0.40
codegen_flags: <defaults>
</compile_context>

<pallas_src>
import jax
import jax.numpy as jnp
from jax.experimental import pallas as pl
from jax.experimental.pallas import tpu as pltpu


def _model_kernel(x_ref, o_ref):
    # x_ref: (TB, D)      input tile
    # o_ref: (2, TB, 2D)  both duplicate output slabs for this row tile
    D = x_ref.shape[1]
    x = x_ref[...]
    t = jnp.tanh(x)        # y = x.view(B, -1).tanh()
    tt = jnp.tanh(t)       # tanh of the appended half after cat(x, y)
    t = t.astype(o_ref.dtype)
    tt = tt.astype(o_ref.dtype)
    # Direct half-slab stores (no VMEM-materialized concatenate); write the
    # same vregs into both duplicate slabs of cat((y, y), dim=-2).
    o_ref[0, :, 0:D] = t
    o_ref[0, :, D:2 * D] = tt
    o_ref[1, :, 0:D] = t
    o_ref[1, :, D:2 * D] = tt


def _pick_tb(B):
    # Full extent for small batches; otherwise a large multiple-of-8 row tile
    # that keeps the per-step footprint (~40*TB*D bytes with double-buffered
    # in+out) at a few MiB — well under the default scoped VMEM on
    # v5e (16 MiB) and v6e/v7x (32 MiB) for typical D.
    if B <= 512:
        return B
    return 512


def model_forward(x, tb=None):
    B, D = x.shape
    if tb is None:
        tb = _pick_tb(B)
    grid = (pl.cdiv(B, tb),)

    out3 = pl.pallas_call(
        _model_kernel,
        out_shape=jax.ShapeDtypeStruct((2, B, 2 * D), x.dtype),
        grid=grid,
        in_specs=[pl.BlockSpec((tb, D), lambda i: (i, 0))],
        out_specs=pl.BlockSpec((2, tb, 2 * D), lambda i: (0, i, 0)),
        compiler_params=pltpu.CompilerParams(
            dimension_semantics=("parallel",)),
    )(x)
    # (2, B, 2D) -> (2B, 2D) is a free contiguous view and matches
    # cat((y, y), dim=-2) exactly.
    return out3.reshape(2 * B, 2 * D)


if __name__ == "__main__":
    key = jax.random.PRNGKey(0)
    # Small 2-D input; D chosen as a multiple of 128 (lane-dense blocks) and
    # B a multiple of 8 so the row tile exercises multiple grid steps.
    B, D = 24, 128
    x = jax.random.normal(key, (B, D), dtype=jnp.float32)

    # Use a small row tile here so the example actually runs several
    # pipelined grid steps (tb=8 -> grid=(3,)).
    y = model_forward(x, tb=8)
    jax.block_until_ready(y)

    # Plain-JAX reference.
    t = jnp.tanh(x)
    y_row = jnp.tanh(jnp.concatenate([x, t], axis=1))
    y_ref = jnp.concatenate([y_row, y_row], axis=0)

    assert y.shape == (2 * B, 2 * D)
    assert jnp.allclose(y, y_ref, atol=1e-6, rtol=1e-6)

    # Also check the default (full-batch tile) path.
    y2 = model_forward(x)
    jax.block_until_ready(y2)
    assert jnp.allclose(y2, y_ref, atol=1e-6, rtol=1e-6)

    print("KERNEL_OK")
</pallas_src>

<mosaic_0001>
module attributes {stable_mosaic.version = 11 : i64} {
  func.func @_model_kernel(%arg0: i32, %arg1: memref<8x128xf32, #tpu.memory_space<vmem>>, %arg2: memref<2x8x256xf32, #tpu.memory_space<vmem>>) attributes {dimension_semantics = [#tpu.dimension_semantics<parallel>], iteration_bounds = array<i64: 3>, scalar_prefetch = 0 : i64, scratch_operands = 0 : i64, tpu.core_type = #tpu.core_type<tc>, window_params = [{transform_indices = @transform_0, window_bounds = array<i64: 8, 128>}, {transform_indices = @transform_1, window_bounds = array<i64: 2, 8, 256>}]} {
    %c0 = arith.constant 0 : index
    %c0_0 = arith.constant 0 : index
    %0 = vector.load %arg1[%c0, %c0_0] : memref<8x128xf32, #tpu.memory_space<vmem>>, vector<8x128xf32>
    %1 = math.tanh %0 : vector<8x128xf32>
    %2 = math.tanh %1 : vector<8x128xf32>
    %c0_1 = arith.constant 0 : index
    %c0_2 = arith.constant 0 : index
    %c0_3 = arith.constant 0 : index
    %3 = vector.load %arg2[%c0_1, %c0_2, %c0_3] : memref<2x8x256xf32, #tpu.memory_space<vmem>>, vector<1x8x128xf32>
    %4 = vector.shape_cast %3 : vector<1x8x128xf32> to vector<8x128xf32>
    %5 = vector.shape_cast %1 : vector<8x128xf32> to vector<1x8x128xf32>
    tpu.vector_store %arg2[%c0_1, %c0_2, %c0_3], %5 {strides = array<i32>} : memref<2x8x256xf32, #tpu.memory_space<vmem>>, vector<1x8x128xf32>,
    %c0_4 = arith.constant 0 : index
    %c0_5 = arith.constant 0 : index
    %c128 = arith.constant 128 : index
    %6 = vector.load %arg2[%c0_4, %c0_5, %c128] : memref<2x8x256xf32, #tpu.memory_space<vmem>>, vector<1x8x128xf32>
    %7 = vector.shape_cast %6 : vector<1x8x128xf32> to vector<8x128xf32>
    %8 = vector.shape_cast %2 : vector<8x128xf32> to vector<1x8x128xf32>
    tpu.vector_store %arg2[%c0_4, %c0_5, %c128], %8 {strides = array<i32>} : memref<2x8x256xf32, #tpu.memory_space<vmem>>, vector<1x8x128xf32>,
    %c1 = arith.constant 1 : index
    %c0_6 = arith.constant 0 : index
    %c0_7 = arith.constant 0 : index
    %9 = vector.load %arg2[%c1, %c0_6, %c0_7] : memref<2x8x256xf32, #tpu.memory_space<vmem>>, vector<1x8x128xf32>
    %10 = vector.shape_cast %9 : vector<1x8x128xf32> to vector<8x128xf32>
    %11 = vector.shape_cast %1 : vector<8x128xf32> to vector<1x8x128xf32>
    tpu.vector_store %arg2[%c1, %c0_6, %c0_7], %11 {strides = array<i32>} : memref<2x8x256xf32, #tpu.memory_space<vmem>>, vector<1x8x128xf32>,
    %c1_8 = arith.constant 1 : index
    %c0_9 = arith.constant 0 : index
    %c128_10 = arith.constant 128 : index
    %12 = vector.load %arg2[%c1_8, %c0_9, %c128_10] : memref<2x8x256xf32, #tpu.memory_space<vmem>>, vector<1x8x128xf32>
    %13 = vector.shape_cast %12 : vector<1x8x128xf32> to vector<8x128xf32>
    %14 = vector.shape_cast %2 : vector<8x128xf32> to vector<1x8x128xf32>
    tpu.vector_store %arg2[%c1_8, %c0_9, %c128_10], %14 {strides = array<i32>} : memref<2x8x256xf32, #tpu.memory_space<vmem>>, vector<1x8x128xf32>,
    return
  }
  func.func @transform_0(%arg0: i32) -> (i32, i32) {
    %c0_i32 = arith.constant 0 : i32
    %c0_i32_0 = arith.constant 0 : i32
    return %arg0, %c0_i32 : i32, i32
  }
  func.func @transform_1(%arg0: i32) -> (i32, i32, i32) {
    %c0_i32 = arith.constant 0 : i32
    %c0_i32_0 = arith.constant 0 : i32
    %c0_i32_1 = arith.constant 0 : i32
    return %c0_i32, %arg0, %c0_i32_0 : i32, i32, i32
  }
}

</mosaic_0001>

<llo_original>
// kernel: tpu_custom_call.1
$region0: #{tpu_custom_call.1}
  #allocation0 [shape = 'u32[]', space=smem, size = 0x4, offset = 0x4, fixed_abs, tag = 'smem constant byte address 0x4 - core index']
  #allocation1 [shape = 'u32[144,128]{1,0:T(1,128)}', space=vmem, size = 0x12000, scoped, tag = 'internal scratch']
  %s0 = inlined_call_operand.hbm [shape: f32[24,128], index: 0, kind: input, shape index: {}]
  %s1 = inlined_call_operand.hbm [shape: f32[2,24,256], index: 1, kind: output, shape index: {}]
  %s2 = sld [smem:[#allocation0]]
  $region41: #{tpu_custom_call.1} parent=0
    _
  %s4 = ssub.s32 1, %s2
  %s5 = scalar_select 0, %s4, %s2
  $region1: #{tpu_custom_call.1} parent=0
    #allocation2 [shape = 'u8[8192]{0}', space=vmem, size = 0x2000, scoped, tag = 'input window, operand 0']
    #allocation3 [shape = 's32[2]{0}', space=sflag, size = 0x8, scoped, tag = 'scoped memory for tpu_custom_call.1']
    #allocation4 [shape = 's32[2]{0}', space=sflag, size = 0x8, scoped, tag = 'scoped memory for tpu_custom_call.1']
    #allocation5 [shape = 'u8[32768]{0}', space=vmem, size = 0x8000, scoped, tag = 'output window, operand 0']
    %6 = vsyncpa [#allocation3], 0
    %s7 = scalar_lea.sflag [#allocation3], 1
    %8 = vsyncpa %s7, 0
    %9 = vsyncpa [#allocation4], 0
    %s10 = scalar_lea.sflag [#allocation4], 1
    %11 = vsyncpa %s10, 0
    loop: start=0, step=1, limit=5
    $region2: #{tpu_custom_call.1} parent=1 // loop_pre_header
      _
    $region3: #{tpu_custom_call.1} parent=1 // loop_header
      %s13 = sphi 0, %s17
      %p14 = scmp.ge.s32.totalorder %s13, 5
      %s23 = sphi 0, %s25
      %s26 = sphi 0, %s23
      %s27 = sphi 0, %s26
      %s43 = sphi 0, %s27
      %s49 = sphi 0, %s51
      %s52 = sphi 0, %s49
      %s53 = sphi 0, %s52
      %s69 = sphi 0, %s53
    $region4: #{tpu_custom_call.1} parent=1 // loop_header_branch
      %16 = sbr.rel (%p14) target = $region8
    $region5: #{tpu_custom_call.1} parent=1 // loop_body
      %s18 = ssub.s32 %s13, 1
      %s19 = ssub.s32 %s13, 2
      %s20 = sadd.s32 %s13, 1
      %s21 = ssub.s32 %s13, %s20
      %p22 = scmp.eq.s32.totalorder %s21, 0
      %s24 = sadd.s32 %s23, 1
      %s25 = scalar_select %p22, %s23, %s24
      %p28 = pneg %p22
      %p29 = scmp.eq.s32.totalorder %s13, 2
      %p30 = por %p28, %p29
      %p31 = scmp.ne.s32.totalorder %s23, %s26
      %p32 = scmp.eq.s32.totalorder %s13, 0
      %p33 = por %p31, %p32
      %p34 = scmp.ne.s32.totalorder %s23, %s26
      %p35 = scmp.eq.s32.totalorder %s18, 2
      %p36 = por %p34, %p35
      %p37 = scmp.ne.s32.totalorder %s26, %s27
      %p38 = scmp.eq.s32.totalorder %s18, 0
      %p39 = por %p37, %p38
      %p40 = scmp.ne.s32.totalorder %s26, %s27
      %p41 = scmp.eq.s32.totalorder %s19, 2
      %p42 = por %p40, %p41
      %p44 = scmp.ne.s32.totalorder %s27, %s43
      %p45 = scmp.eq.s32.totalorder %s19, 0
      %p46 = por %p44, %p45
      %s47 = ssub.s32 %s13, %s20
      %p48 = scmp.eq.s32.totalorder %s47, 0
      %s50 = sadd.s32 %s49, 1
      %s51 = scalar_select %p48, %s49, %s50
      %p54 = pneg %p48
      %p55 = scmp.eq.s32.totalorder %s13, 2
      %p56 = por %p54, %p55
      %p57 = scmp.ne.s32.totalorder %s49, %s52
      %p58 = scmp.eq.s32.totalorder %s13, 0
      %p59 = por %p57, %p58
      %p60 = scmp.ne.s32.totalorder %s49, %s52
      %p61 = scmp.eq.s32.totalorder %s18, 2
      %p62 = por %p60, %p61
      %p63 = scmp.ne.s32.totalorder %s52, %s53
      %p64 = scmp.eq.s32.totalorder %s18, 0
      %p65 = por %p63, %p64
      %p66 = scmp.ne.s32.totalorder %s52, %s53
      %p67 = scmp.eq.s32.totalorder %s19, 2
      %p68 = por %p66, %p67
      %p70 = scmp.ne.s32.totalorder %s53, %s69
      %p71 = scmp.eq.s32.totalorder %s19, 0
      %p72 = por %p70, %p71
      %p73 = scmp.le.s32.totalorder 1, %s13
      %p74 = scmp.lt.s32.totalorder %s13, 4
      %p75 = pnand %p73, %p74
      %p76 = pneg %p75
      // Predicated region
      $region9: #{tpu_custom_call.1} parent=5 // pred_check
        _
      $region10: #{tpu_custom_call.1} parent=5 // pred_check_branch
        %78 = sbr.rel (%p75) target = $region12
      $region11: #{tpu_custom_call.1} parent=5 // pred_region
        %s79 = ssub.s32 %s13, 1
      $region12: #{tpu_custom_call.1} parent=5 // pred_fallthru
        _
      %p80 = scmp.lt.s32.totalorder %s13, 3
      // Predicated region
      $region13: #{tpu_custom_call.1} parent=5 // pred_check
        %p81 = pneg %p80
      $region14: #{tpu_custom_call.1} parent=5 // pred_check_branch
        %83 = sbr.rel (%p81) target = $region16
      $region15: #{tpu_custom_call.1} parent=5 // pred_region
        // Predicated region
        $region17: #{tpu_custom_call.1} parent=15 // pred_check
          %p84 = pneg %p33
        $region18: #{tpu_custom_call.1} parent=15 // pred_check_branch
          %86 = sbr.rel (%p84) target = $region20
        $region19: #{tpu_custom_call.1} parent=15 // pred_region
          %s87 = sand.u32 %s23, 1
          %s88 = scalar_lea.sflag [#allocation3], %s87
          %s89 = sand.u32 %s23, 1
          %s90 = smul.addr %s89, 8
          %s91 = scalar_lea.vmem [#allocation2], %s90
          %s93 = ssub.s32 128, 128
          %94 = vsyncadd %s88, %s93
          %s95 = smul.addr %s13, 128
          %s96 = scalar_lea.hbm %s0, %s95
          %s98 = sshll.u32 %s91, 4
          %s99 = int_to_ptr.vmem [resolvable:$true] %s98
          %101 = dma.hbm_to_vmem [thread:$0]  %s96, 128, %s99, %s88
        $region20: #{tpu_custom_call.1} parent=15 // pred_fallthru
          _
      $region16: #{tpu_custom_call.1} parent=5 // pred_fallthru
        _
      %p102 = scmp.le.s32.totalorder 1, %s13
      %p103 = scmp.lt.s32.totalorder %s13, 4
      %p104 = pnand %p102, %p103
      %p105 = pneg %p104
      // Predicated region
      $region21: #{tpu_custom_call.1} parent=5 // pred_check
        _
      $region22: #{tpu_custom_call.1} parent=5 // pred_check_branch
        %107 = sbr.rel (%p104) target = $region24
      $region23: #{tpu_custom_call.1} parent=5 // pred_region
        %s108 = ssub.s32 %s13, 1
        %s109 = sand.u32 %s26, 1
        %s110 = scalar_lea.sflag [#allocation3], %s109
        %s111 = sand.u32 %s26, 1
        %s112 = smul.addr %s111, 8
        %s113 = scalar_lea.vmem [#allocation2], %s112
        // Predicated region
        $region25: #{tpu_custom_call.1} parent=23 // pred_check
          %p114 = pneg %p39
        $region26: #{tpu_custom_call.1} parent=23 // pred_check_branch
          %116 = sbr.rel (%p114) target = $region28
        $region27: #{tpu_custom_call.1} parent=23 // pred_region
          %117 = dma.done %s110, 128
        $region28: #{tpu_custom_call.1} parent=23 // pred_fallthru
          _
        %s118 = sand.u32 %s26, 1
        %s119 = scalar_lea.sflag [#allocation3], %s118
        %s120 = sand.u32 %s26, 1
        %s121 = smul.addr %s120, 8
        %s122 = scalar_lea.vmem [#allocation2], %s121
        %p123 = pneg %p39
        %p124 = pneg %p36
        %p125 = pneg %p65
        %p126 = pneg %p62
        %s127 = sand.u32 %s52, 1
        %s128 = scalar_lea.sflag [#allocation4], %s127
        %s129 = sand.u32 %s52, 1
        %s130 = smul.addr %s129, 32
        %s131 = scalar_lea.vmem [#allocation5], %s130
        %v132 = vld [vmem:[%s113] sm:$0xff]
        %v133 = vtanh.pop %v132
        %v134 = vtanh.pop %v133
        %135 = vst [vmem:[%s131] sm:$0xff] %v133
        %136 = vst [vmem:[%s131 + $0x8] sm:$0xff] %v134
        %s137 = scalar_lea.vmem %s131, 16 [#allocation5]
        %138 = vst [vmem:[%s137] sm:$0xff] %v133
        %139 = vst [vmem:[%s137 + $0x8] sm:$0xff] %v134
        %s140 = sand.u32 %s52, 1
        %s141 = scalar_lea.sflag [#allocation4], %s140
        %s142 = sand.u32 %s52, 1
        %s143 = smul.addr %s142, 32
        %s144 = scalar_lea.vmem [#allocation5], %s143
        // Predicated region
        $region29: #{tpu_custom_call.1} parent=23 // pred_check
          %p145 = pneg %p62
        $region30: #{tpu_custom_call.1} parent=23 // pred_check_branch
          %147 = sbr.rel (%p145) target = $region32
        $region31: #{tpu_custom_call.1} parent=23 // pred_region
          %s149 = ssub.s32 512, 512
          %150 = vsyncadd %s141, %s149
          %s151 = smul.addr %s18, 2
          %s152 = smul.addr %s151, 128
          %s153 = scalar_lea.hbm %s1, %s152
          %s154 = sshll.u32 %s144, 4
          %s155 = int_to_ptr.vmem [resolvable:$true] %s154
          %160 = dma.vmem_to_hbm [thread:$0]  %s155, 512, %s153, %s141, 256, 768, 16
        $region32: #{tpu_custom_call.1} parent=23 // pred_fallthru
          _
      $region24: #{tpu_custom_call.1} parent=5 // pred_fallthru
        _
      %p161 = scmp.le.s32.totalorder 2, %s13
      // Predicated region
      $region33: #{tpu_custom_call.1} parent=5 // pred_check
        %p162 = pneg %p161
      $region34: #{tpu_custom_call.1} parent=5 // pred_check_branch
        %164 = sbr.rel (%p162) target = $region36
      $region35: #{tpu_custom_call.1} parent=5 // pred_region
        %s165 = ssub.s32 %s13, 2
        // Predicated region
        $region37: #{tpu_custom_call.1} parent=35 // pred_check
          %p166 = pneg %p68
        $region38: #{tpu_custom_call.1} parent=35 // pred_check_branch
          %168 = sbr.rel (%p166) target = $region40
        $region39: #{tpu_custom_call.1} parent=35 // pred_region
          %s169 = sand.u32 %s53, 1
          %s170 = scalar_lea.sflag [#allocation4], %s169
          %s171 = sand.u32 %s53, 1
          %s172 = smul.addr %s171, 32
          %s173 = scalar_lea.vmem [#allocation5], %s172
          %174 = dma.done %s170, 512
        $region40: #{tpu_custom_call.1} parent=35 // pred_fallthru
          _
      $region36: #{tpu_custom_call.1} parent=5 // pred_fallthru
        _
    $region6: #{tpu_custom_call.1} parent=1 // loop_footer
      %s17 = sadd.s32 1, %s13
    $region7: #{tpu_custom_call.1} parent=1 // loop_footer_branch
      %12 = sbr.rel target = $region3
    $region8: #{tpu_custom_call.1} parent=1 // loop_exit
      _
    %175 = vsyncpa [#allocation3], 1
    %s176 = scalar_lea.sflag [#allocation3], 1
    %177 = vsyncpa %s176, 1
    %178 = vsyncpa [#allocation4], 1
    %s179 = scalar_lea.sflag [#allocation4], 1
    %180 = vsyncpa %s179, 1

</llo_original>
